<compile_context>
chip_gen: v7x
topology: tpu7x:2x2x1
jax: 0.10.0
libtpu: 0.0.40
codegen_flags: <defaults>
</compile_context>

<pallas_src>
import functools
import math

import jax
import jax.numpy as jnp
import numpy as np
from jax.experimental import pallas as pl
from jax.experimental.pallas import tpu as pltpu

# Per-block input byte budget (the pipeline double-buffers, so ~2x this is
# resident). A few MiB already reaches ~85% of HBM roofline; staying small
# keeps us inside every generation's scoped-VMEM default (16 MiB on v5e).
_BLOCK_BUDGET_BYTES = 4 * 1024 * 1024
_VMEM_LIMIT_BYTES = 32 * 1024 * 1024
_MAX_TILE_LANES = 8192          # cap on the unrolled 128-lane chunks per step


def _round_up(x, m):
    return (x + m - 1) // m * m


def _largest_divisor_leq(n, cap):
    cap = max(1, min(n, cap))
    for d in range(cap, 0, -1):
        if n % d == 0:
            return d
    return 1


def _gem_kernel_hw_lanes(p_ref, x_ref, o_ref, acc_ref, *,
                         inv_hw, eps, n_pad, compute_dtype):
    """Flattened H*W on lanes, reduced across the trailing grid axis.

    p_ref : SMEM (1,) f32          x_ref : VMEM (NB, C, TILE)
    o_ref : VMEM (NB, C, 1)        acc_ref: VMEM (NB, C, 128) f32 partial sums
    """
    t = pl.program_id(1)

    @pl.when(t == 0)
    def _():
        acc_ref[...] = jnp.zeros_like(acc_ref)

    p = p_ref[0]
    x = x_ref[...].astype(compute_dtype)
    xc = jnp.maximum(x, jnp.asarray(eps, dtype=compute_dtype))
    # clamp(x, eps) ** p with positive base -> exp/log on the EUP.
    xp = jnp.exp(p.astype(compute_dtype) * jnp.log(xc))

    # Lane-dense partial sums: pure VPU adds in the hot loop; the single
    # cross-lane (XLU) reduction happens once in the epilogue.
    n_chunks = x_ref.shape[-1] // 128
    for j in range(n_chunks):
        acc_ref[...] += xp[:, :, j * 128:(j + 1) * 128].astype(jnp.float32)

    @pl.when(t == pl.num_programs(1) - 1)
    def _():
        total = jnp.sum(acc_ref[...], axis=-1, keepdims=True)    # (NB, C, 1)
        if n_pad:
            # Zero padding clamps to eps and contributed eps**p each; remove.
            total = total - n_pad * jnp.exp(p * math.log(eps))
        mean = total * inv_hw                                     # avg pool
        o_ref[...] = jnp.exp(jnp.log(mean) / p).astype(o_ref.dtype)


def _gem_kernel_c_lanes(p_ref, x_ref, o_ref, *, inv_hw, eps, compute_dtype):
    """Channels on lanes (large C, small HW); whole reduction in one block.

    p_ref : SMEM (1,) f32   x_ref : VMEM (NB, HW, C_tile)
    o_ref : VMEM (NB, 1, C_tile)  (fully lane-dense output)
    """
    p = p_ref[0]
    x = x_ref[...].astype(compute_dtype)
    xc = jnp.maximum(x, jnp.asarray(eps, dtype=compute_dtype))
    xp = jnp.exp(p.astype(compute_dtype) * jnp.log(xc)).astype(jnp.float32)
    total = jnp.sum(xp, axis=1, keepdims=True)                    # (NB,1,Ct)
    mean = total * inv_hw
    o_ref[...] = jnp.exp(jnp.log(mean) / p).astype(o_ref.dtype)


def gem_pallas(x, p, eps=1e-6, compute_dtype=jnp.float32):
    """x: (N, C, H, W), p: (1,) learnable exponent -> (N, C, 1, 1)."""
    N, C, H, W = x.shape
    HW = H * W
    itemsize = x.dtype.itemsize
    budget = _BLOCK_BUDGET_BYTES
    p_arr = jnp.asarray(p, jnp.float32).reshape(1)

    # Layout choice: put the 128-aligned axis on lanes.
    min_c_block = 128 if C % 128 == 0 else C
    use_c_lanes = (C >= 128
                   and (HW % 128 != 0 or HW <= 1024)
                   and HW * min_c_block * itemsize <= budget)

    if use_c_lanes:
        # ---- channels-on-lanes path (large C, small HW) ------------------
        x_t = jnp.transpose(x.reshape(N, C, HW), (0, 2, 1))       # (N, HW, C)
        c_tile = C
        if C * HW * itemsize > budget and C % 128 == 0:
            for d in range(C // 128, 0, -1):
                cand = d * 128
                if C % cand == 0 and cand * HW * itemsize <= budget:
                    c_tile = cand
                    break
            else:
                c_tile = 128
        nb = _largest_divisor_leq(
            N, max(1, budget // max(1, c_tile * HW * itemsize)))
        grid = (N // nb, C // c_tile)

        kernel = functools.partial(_gem_kernel_c_lanes, inv_hw=1.0 / HW,
                                   eps=float(eps), compute_dtype=compute_dtype)
        out = pl.pallas_call(
            kernel,
            out_shape=jax.ShapeDtypeStruct((N, 1, C), x.dtype),
            grid=grid,
            in_specs=[
                pl.BlockSpec(memory_space=pltpu.MemorySpace.SMEM),       # p
                pl.BlockSpec((nb, HW, c_tile), lambda n, c: (n, 0, c)),  # x
            ],
            out_specs=pl.BlockSpec((nb, 1, c_tile), lambda n, c: (n, 0, c)),
            compiler_params=pltpu.CompilerParams(
                dimension_semantics=("parallel", "parallel"),
                vmem_limit_bytes=_VMEM_LIMIT_BYTES),
        )(p_arr, x_t)
        return out.reshape(N, C, 1, 1)

    # ---- flattened-HW-on-lanes path --------------------------------------
    hw_pad = _round_up(HW, 128)
    x_flat = x.reshape(N, C, HW)
    if hw_pad != HW:
        x_flat = jnp.pad(x_flat, ((0, 0), (0, 0), (0, hw_pad - HW)))

    # Spatial tile: multiple of 128 dividing hw_pad, within the byte budget
    # (C- and dtype-aware) and the unroll cap.
    lane_cap = max(128, (budget // max(1, C * itemsize)) // 128 * 128)
    max_tile = min(hw_pad, _MAX_TILE_LANES, lane_cap)
    tile = 128
    cand = max_tile // 128 * 128
    while cand >= 128:
        if hw_pad % cand == 0:
            tile = cand
            break
        cand -= 128
    n_tiles = hw_pad // tile

    # Fold batch images into one block to fill sublanes / amortize grid steps.
    nb = _largest_divisor_leq(N, max(1, budget // max(1, C * tile * itemsize)))
    grid = (N // nb, n_tiles)

    kernel = functools.partial(_gem_kernel_hw_lanes, inv_hw=1.0 / HW,
                               eps=float(eps), n_pad=hw_pad - HW,
                               compute_dtype=compute_dtype)
    out = pl.pallas_call(
        kernel,
        out_shape=jax.ShapeDtypeStruct((N, C, 1), x.dtype),
        grid=grid,
        in_specs=[
            pl.BlockSpec(memory_space=pltpu.MemorySpace.SMEM),            # p
            pl.BlockSpec((nb, C, tile), lambda n, t: (n, 0, t)),          # x
        ],
        out_specs=pl.BlockSpec((nb, C, 1), lambda n, t: (n, 0, 0)),
        scratch_shapes=[pltpu.VMEM((nb, C, 128), jnp.float32)],
        compiler_params=pltpu.CompilerParams(
            dimension_semantics=("parallel", "arbitrary"),
            vmem_limit_bytes=_VMEM_LIMIT_BYTES),
    )(p_arr, x_flat)
    return out.reshape(N, C, 1, 1)


def gem_ref(x, p, eps=1e-6):
    """Pure-JAX reference mirroring the PyTorch forward exactly."""
    pv = jnp.asarray(p, jnp.float32).reshape(())
    xc = jnp.maximum(x, eps)
    pooled = jnp.mean(xc ** pv, axis=(2, 3), keepdims=True)      # (N, C, 1, 1)
    return pooled ** (1.0 / pv)


if __name__ == "__main__":
    key = jax.random.PRNGKey(0)

    # Learnable exponent parameter, initialized exactly like the module.
    p = jnp.ones((1,), dtype=jnp.float32) * 3.0
    eps = 1e-6

    cases = [
        (2, 4, 16, 16),    # module-scale test shape (HW-on-lanes path)
        (2, 4, 7, 7),      # non-128-multiple HW -> padded + eps**p correction
        (2, 128, 7, 7),    # large-C / small-HW -> channels-on-lanes path
    ]
    for i, shape in enumerate(cases):
        k = jax.random.fold_in(key, i)
        x = jax.random.normal(k, shape, dtype=jnp.float32)
        out = jax.block_until_ready(gem_pallas(x, p, eps=eps))
        ref = gem_ref(x, p, eps=eps)
        np.testing.assert_allclose(np.asarray(out), np.asarray(ref),
                                   rtol=1e-4, atol=1e-5)
        assert out.shape == (shape[0], shape[1], 1, 1)

    print("KERNEL_OK")
</pallas_src>

<mosaic_0001>
module attributes {stable_mosaic.version = 11 : i64} {
  func.func @_gem_kernel_hw_lanes(%arg0: i32, %arg1: i32, %arg2: memref<1xf32, #tpu.memory_space<smem>>, %arg3: memref<2x4x256xf32, #tpu.memory_space<vmem>>, %arg4: memref<2x4x1xf32, #tpu.memory_space<vmem>>, %arg5: memref<2x4x128xf32, #tpu.memory_space<vmem>>) attributes {dimension_semantics = [#tpu.dimension_semantics<parallel>, #tpu.dimension_semantics<arbitrary>], iteration_bounds = array<i64: 1, 1>, scalar_prefetch = 0 : i64, scratch_operands = 1 : i64, tpu.core_type = #tpu.core_type<tc>, window_params = [{transform_indices = @transform_0, window_bounds = array<i64: 1>}, {transform_indices = @transform_1, window_bounds = array<i64: 2, 4, 256>}, {transform_indices = @transform_2, window_bounds = array<i64: 2, 4, 1>}]} {
    %c0_i32 = arith.constant 0 : i32
    %0 = arith.cmpi eq, %arg1, %c0_i32 : i32
    %1 = arith.extui %0 : i1 to i32
    %c0_i32_0 = arith.constant 0 : i32
    %2 = arith.cmpi ne, %1, %c0_i32_0 : i32
    scf.if %2 {
      %cst_18 = arith.constant 0.000000e+00 : f32
      %22 = vector.broadcast %cst_18 : f32 to vector<2x4x128xf32>
      %c0_19 = arith.constant 0 : index
      %c0_20 = arith.constant 0 : index
      %c0_21 = arith.constant 0 : index
      %23 = vector.load %arg5[%c0_19, %c0_20, %c0_21] : memref<2x4x128xf32, #tpu.memory_space<vmem>>, vector<2x4x128xf32>
      tpu.vector_store %arg5[%c0_19, %c0_20, %c0_21], %22 {strides = array<i32>} : memref<2x4x128xf32, #tpu.memory_space<vmem>>, vector<2x4x128xf32>,
    } else {
    }
    %c0 = arith.constant 0 : index
    %3 = memref.load %arg2[%c0] : memref<1xf32, #tpu.memory_space<smem>>
    %c0_1 = arith.constant 0 : index
    %c0_2 = arith.constant 0 : index
    %c0_3 = arith.constant 0 : index
    %4 = vector.load %arg3[%c0_1, %c0_2, %c0_3] : memref<2x4x256xf32, #tpu.memory_space<vmem>>, vector<2x4x256xf32>
    %cst = arith.constant 9.99999997E-7 : f32
    %5 = vector.broadcast %cst : f32 to vector<2x4x256xf32>
    %6 = arith.maximumf %4, %5 : vector<2x4x256xf32>
    %7 = math.log %6 : vector<2x4x256xf32>
    %8 = vector.broadcast %3 : f32 to vector<2x4x256xf32>
    %9 = arith.mulf %8, %7 : vector<2x4x256xf32>
    %10 = math.exp %9 : vector<2x4x256xf32>
    %c0_4 = arith.constant 0 : index
    %c0_5 = arith.constant 0 : index
    %c0_6 = arith.constant 0 : index
    %11 = vector.load %arg5[%c0_4, %c0_5, %c0_6] : memref<2x4x128xf32, #tpu.memory_space<vmem>>, vector<2x4x128xf32>
    %12 = vector.extract_strided_slice %10 {offsets = [0, 0, 0], sizes = [2, 4, 128], strides = [1, 1, 1]} : vector<2x4x256xf32> to vector<2x4x128xf32>
    %13 = arith.addf %11, %12 : vector<2x4x128xf32>
    %c0_7 = arith.constant 0 : index
    %c0_8 = arith.constant 0 : index
    %c0_9 = arith.constant 0 : index
    %14 = vector.load %arg5[%c0_7, %c0_8, %c0_9] : memref<2x4x128xf32, #tpu.memory_space<vmem>>, vector<2x4x128xf32>
    tpu.vector_store %arg5[%c0_7, %c0_8, %c0_9], %13 {strides = array<i32>} : memref<2x4x128xf32, #tpu.memory_space<vmem>>, vector<2x4x128xf32>,
    %c0_10 = arith.constant 0 : index
    %c0_11 = arith.constant 0 : index
    %c0_12 = arith.constant 0 : index
    %15 = vector.load %arg5[%c0_10, %c0_11, %c0_12] : memref<2x4x128xf32, #tpu.memory_space<vmem>>, vector<2x4x128xf32>
    %16 = vector.extract_strided_slice %10 {offsets = [0, 0, 128], sizes = [2, 4, 128], strides = [1, 1, 1]} : vector<2x4x256xf32> to vector<2x4x128xf32>
    %17 = arith.addf %15, %16 : vector<2x4x128xf32>
    %c0_13 = arith.constant 0 : index
    %c0_14 = arith.constant 0 : index
    %c0_15 = arith.constant 0 : index
    %18 = vector.load %arg5[%c0_13, %c0_14, %c0_15] : memref<2x4x128xf32, #tpu.memory_space<vmem>>, vector<2x4x128xf32>
    tpu.vector_store %arg5[%c0_13, %c0_14, %c0_15], %17 {strides = array<i32>} : memref<2x4x128xf32, #tpu.memory_space<vmem>>, vector<2x4x128xf32>,
    %c0_i32_16 = arith.constant 0 : i32
    %19 = arith.cmpi eq, %arg1, %c0_i32_16 : i32
    %20 = arith.extui %19 : i1 to i32
    %c0_i32_17 = arith.constant 0 : i32
    %21 = arith.cmpi ne, %20, %c0_i32_17 : i32
    scf.if %21 {
      %c0_18 = arith.constant 0 : index
      %c0_19 = arith.constant 0 : index
      %c0_20 = arith.constant 0 : index
      %22 = vector.load %arg5[%c0_18, %c0_19, %c0_20] : memref<2x4x128xf32, #tpu.memory_space<vmem>>, vector<2x4x128xf32>
      %cst_21 = arith.constant dense<0.000000e+00> : vector<2x4xf32>
      %23 = vector.multi_reduction <add>, %22, %cst_21 [2] : vector<2x4x128xf32> to vector<2x4xf32>
      %24 = vector.shape_cast %23 : vector<2x4xf32> to vector<2x4x1xf32>
      %cst_22 = arith.constant 3.906250e-03 : f32
      %25 = vector.broadcast %cst_22 : f32 to vector<2x4x1xf32>
      %26 = arith.mulf %24, %25 : vector<2x4x1xf32>
      %27 = math.log %26 : vector<2x4x1xf32>
      %28 = vector.broadcast %3 : f32 to vector<2x4x1xf32>
      %29 = arith.divf %27, %28 : vector<2x4x1xf32>
      %30 = math.exp %29 : vector<2x4x1xf32>
      %c0_23 = arith.constant 0 : index
      %c0_24 = arith.constant 0 : index
      %c0_25 = arith.constant 0 : index
      %31 = vector.load %arg4[%c0_23, %c0_24, %c0_25] : memref<2x4x1xf32, #tpu.memory_space<vmem>>, vector<2x4x1xf32>
      tpu.vector_store %arg4[%c0_23, %c0_24, %c0_25], %30 {strides = array<i32>} : memref<2x4x1xf32, #tpu.memory_space<vmem>>, vector<2x4x1xf32>,
    } else {
    }
    return
  }
  func.func @transform_0(%arg0: i32, %arg1: i32) -> i32 {
    %c0_i32 = arith.constant 0 : i32
    %c0_i32_0 = arith.constant 0 : i32
    return %c0_i32 : i32
  }
  func.func @transform_1(%arg0: i32, %arg1: i32) -> (i32, i32, i32) {
    %c0_i32 = arith.constant 0 : i32
    %c0_i32_0 = arith.constant 0 : i32
    return %arg0, %c0_i32, %arg1 : i32, i32, i32
  }
  func.func @transform_2(%arg0: i32, %arg1: i32) -> (i32, i32, i32) {
    %c0_i32 = arith.constant 0 : i32
    %c0_i32_0 = arith.constant 0 : i32
    %c0_i32_1 = arith.constant 0 : i32
    return %arg0, %c0_i32, %c0_i32_0 : i32, i32, i32
  }
}

</mosaic_0001>

<llo_original>
// kernel: tpu_custom_call.1
$region0: #{tpu_custom_call.1}
  #allocation0 [shape = 'u32[]', space=smem, size = 0x4, offset = 0x4, fixed_abs, tag = 'smem constant byte address 0x4 - core index']
  #allocation1 [shape = 'u32[144,128]{1,0:T(1,128)}', space=vmem, size = 0x12000, scoped, tag = 'internal scratch']
  #allocation2 [shape = 'f32[2,4,128]{2,1,0:T(4,128)}', space=vmem, size = 0x1000, scoped, tag = 'scratch operand']
  #allocation3 [shape = 'f32[1]{0:T(128)S(6)}', space=smem, size = 0x200, scoped, tag = 'scoped memory for tpu_custom_call.1']
  %s0 = inlined_call_operand.<no memory space> [shape: f32[1], index: 0, kind: input, shape index: {}]
  %s1 = inlined_call_operand.hbm [shape: f32[2,4,256], index: 1, kind: input, shape index: {}]
  %s2 = inlined_call_operand.vmem [shape: f32[2,4,1], index: 2, kind: output, shape index: {}]
  %s3 = sld [smem:[#allocation0]]
  $region30: #{tpu_custom_call.1} parent=0
    _
  %s5 = ssub.s32 1, %s3
  %s6 = scalar_select 0, %s5, %s3
  %7 = sst [smem:[#allocation3]] %s0
  $region1: #{tpu_custom_call.1} parent=0
    #allocation4 [shape = 'u8[8192]{0}', space=vmem, size = 0x2000, scoped, tag = 'input window, operand 1, single buffered']
    #allocation5 [shape = 's32[1]{0}', space=sflag, size = 0x4, scoped, tag = 'scoped memory for tpu_custom_call.1']
    %8 = vsyncpa [#allocation5], 0
    // Predicated region
    $region2: #{tpu_custom_call.1} parent=1 // pred_check
      _
    $region3: #{tpu_custom_call.1} parent=1 // pred_check_branch
      %10 = sbr.rel (0) target = $region5
    $region4: #{tpu_custom_call.1} parent=1 // pred_region
      _
    $region5: #{tpu_custom_call.1} parent=1 // pred_fallthru
      _
    // Predicated region
    $region6: #{tpu_custom_call.1} parent=1 // pred_check
      _
    $region7: #{tpu_custom_call.1} parent=1 // pred_check_branch
      %12 = sbr.rel (0) target = $region9
    $region8: #{tpu_custom_call.1} parent=1 // pred_region
      %s14 = ssub.s32 256, 256
      %15 = vsyncadd [#allocation5], %s14
      %s16 = sshll.u32 [#allocation4], 4
      %s17 = int_to_ptr.vmem [resolvable:$true] %s16
      %22 = dma.hbm_to_vmem [thread:$0]  %s1, 256, %s17, [#allocation5], 128, 128, 8
    $region9: #{tpu_custom_call.1} parent=1 // pred_fallthru
      _
    // Predicated region
    $region10: #{tpu_custom_call.1} parent=1 // pred_check
      _
    $region11: #{tpu_custom_call.1} parent=1 // pred_check_branch
      %24 = sbr.rel (0) target = $region13
    $region12: #{tpu_custom_call.1} parent=1 // pred_region
      %25 = dma.done [#allocation5], 256
    $region13: #{tpu_custom_call.1} parent=1 // pred_fallthru
      _
    %p26 = scmp.eq.s32.totalorder 0, 0
    // Predicated region
    $region14: #{tpu_custom_call.1} parent=1 // pred_check
      %p27 = pneg %p26
    $region15: #{tpu_custom_call.1} parent=1 // pred_check_branch
      %29 = sbr.rel (%p27) target = $region17
    $region16: #{tpu_custom_call.1} parent=1 // pred_region
      %30 = vst [vmem:[#allocation2] sm:$0xf] 0.0
      %31 = vst [vmem:[#allocation2 + $0x4] sm:$0xf] 0.0
    $region17: #{tpu_custom_call.1} parent=1 // pred_fallthru
      _
    %s32 = sld [smem:[#allocation3]]
    %v33 = vld [vmem:[#allocation4] sm:$0xff]
    %v34 = vld [vmem:[#allocation4 + $0x8] sm:$0xff]
    %v35 = vmax.f32 %v33, 1e-06
    %v36 = vmax.f32 %v34, 1e-06
    %v37 = vlog2.pop %v35
    %v38 = vmul.f32 %v37, 0.6931472
    %v39 = vlog2.pop %v36
    %v40 = vmul.f32 %v39, 0.6931472
    %v41 = vstv %s32
    %v42 = vmul.f32 %v41, %v38
    %v43 = vmul.f32 %v41, %v40
    %v44 = vmul.f32 %v42, 1.442695
    %v45 = vpow.pop %v44
    %v46 = vmul.f32 %v43, 1.442695
    %v47 = vpow.pop %v46
    %v48 = vld [vmem:[#allocation2] sm:$0xf]
    %v49 = vld [vmem:[#allocation2 + $0x4] sm:$0xf]
    %v50 = vadd.f32 %v48, %v45
    %v51 = vadd.f32 %v49, %v47
    %52 = vst [vmem:[#allocation2] sm:$0xf] %v50
    %53 = vst [vmem:[#allocation2 + $0x4] sm:$0xf] %v51
    %v54 = vld [vmem:[#allocation2] sm:$0xf]
    %v55 = vld [vmem:[#allocation2 + $0x4] sm:$0xf]
    %v58 = vcombine.high %v45, %v45
    %v59 = vcombine.high %v47, %v47
    %v62 = vadd.f32 %v54, %v58
    %v63 = vadd.f32 %v55, %v59
    %64 = vst [vmem:[#allocation2] sm:$0xf] %v62
    %65 = vst [vmem:[#allocation2 + $0x4] sm:$0xf] %v63
    // Predicated region
    $region18: #{tpu_custom_call.1} parent=1 // pred_check
      %p66 = pneg %p26
    $region19: #{tpu_custom_call.1} parent=1 // pred_check_branch
      %68 = sbr.rel (%p66) target = $region21
    $region20: #{tpu_custom_call.1} parent=1 // pred_region
      %v69 = vld [vmem:[#allocation2] sm:$0xf]
      %v70 = vld [vmem:[#allocation2 + $0x4] sm:$0xf]
      %vm71 = vcmask 1043456
      %v72 = vsel %vm71, %v69, 0.0
      %73 = vadd.xlane.f32.xlu0 %v72
      %v74 = vpop.xlane.xlu0 %73
      %v75 = vsel %vm71, %v70, 0.0
      %76 = vadd.xlane.f32.xlu0 %v75
      %v77 = vpop.xlane.xlu0 %76
      %v78 = vmul.f32 %v74, 0.00390625
      %v79 = vmul.f32 %v77, 0.00390625
      %v80 = vlog2.pop %v78
      %v81 = vmul.f32 %v80, 0.6931472
      %v82 = vlog2.pop %v79
      %v83 = vmul.f32 %v82, 0.6931472
      %v84 = vrcp.pop %v41
      %v85 = vmul.f32 %v81, %v84
      %v86 = vmul.f32 %v83, %v84
      %v87 = vmul.f32 %v85, 1.442695
      %v88 = vpow.pop %v87
      %v89 = vmul.f32 %v86, 1.442695
      %v90 = vpow.pop %v89
      %vm91 = vcmask 3072
      %92 = vst.msk [vmem:[%s2] sm:$0xf] %vm91, %v88
      %93 = vst.msk [vmem:[%s2 + $0x4] sm:$0xf] %vm91, %v90
    $region21: #{tpu_custom_call.1} parent=1 // pred_fallthru
      _
    // Predicated region
    $region22: #{tpu_custom_call.1} parent=1 // pred_check
      _
    $region23: #{tpu_custom_call.1} parent=1 // pred_check_branch
      %95 = sbr.rel (0) target = $region25
    $region24: #{tpu_custom_call.1} parent=1 // pred_region
      _
    $region25: #{tpu_custom_call.1} parent=1 // pred_fallthru
      _
    // Predicated region
    $region26: #{tpu_custom_call.1} parent=1 // pred_check
      _
    $region27: #{tpu_custom_call.1} parent=1 // pred_check_branch
      %97 = sbr.rel (0) target = $region29
    $region28: #{tpu_custom_call.1} parent=1 // pred_region
      _
    $region29: #{tpu_custom_call.1} parent=1 // pred_fallthru
      _
    %98 = vsyncpa [#allocation5], 1

</llo_original>
